<compile_context>
chip_gen: v5e
topology: v5e:2x2
jax: 0.10.0
libtpu: 0.0.40
codegen_flags: <defaults>
</compile_context>

<pallas_src>
import jax
import jax.numpy as jnp
import numpy as np
from jax import lax
from jax.experimental import pallas as pl
from jax.experimental.pallas import tpu as pltpu

EPS = 1e-5  # nn.BatchNorm1d default eps


# ----------------------------------------------------------------------------------- #
# Fused kernel factory: all ConvBlocks + final Linear in one kernel body
# ----------------------------------------------------------------------------------- #
def _make_fused_kernel(*, B, L, Wm, Ws, pads, kernels, couts, cins, cpools, has_pool,
                       out_feat, w_offs, pm_offs, lin_w_off, c_offs, mask_offs, lb_off):
    nblk = len(kernels)

    def kernel(x_ref, w_ref, c_ref, o_ref):
        # x_ref : (Cin0, B*(L+2P)) f32 -- batch folded on the lane axis, per-batch zero
        #         margins of width P around each valid window of length L.
        # w_ref : packed bf16 MXU-operand slab;  c_ref : packed f32 scale/bias/mask slab.
        h = x_ref[...]                                            # (Cin0, Ws[0]) f32

        for i in range(nblk):
            K, p, cout, cin = kernels[i], pads[i], couts[i], cins[i]
            wn = Ws[i + 1]
            wo, co = w_offs[i], c_offs[i]

            # One MXU push: rows [k*Cout:(k+1)*Cout] = tap-k weights, last Cout rows = the
            # 1x1 residual conv.  Operands bf16, accumulate f32.
            w = w_ref[wo: wo + (K + 1) * cout, 0:cin]             # bf16
            z = jnp.dot(w, h.astype(jnp.bfloat16),
                        preferred_element_type=jnp.float32)       # ((K+1)*Cout, Ws[i])

            # Per-tap time shifts as static lane-offset slices of the matmul result.
            zmain = z[0:cout, 0:wn]
            for k in range(1, K):
                zmain = zmain + z[k * cout:(k + 1) * cout, k:k + wn]
            zres = z[K * cout:(K + 1) * cout, p:p + wn]

            # BN scale applied post-matmul (keeps bf16 weights identical to the module's),
            # BN-folded conv bias and residual bias added, then the two ReLU branches.
            s_col = c_ref[co: co + cout, 0:1]
            bm_col = c_ref[co + cout: co + 2 * cout, 0:1]
            br_col = c_ref[co + 2 * cout: co + 3 * cout, 0:1]
            y = (jnp.maximum(zmain * s_col + bm_col, 0.0)         # Conv->BN->ReLU (Dropout=id)
                 + jnp.maximum(zres + br_col, 0.0))               # + ReLU(1x1 conv)

            # AvgPool1d over the channel axis as a small matmul (identity when pool=(1,1)).
            if has_pool:
                pm = w_ref[pm_offs[i]: pm_offs[i] + cpools[i], 0:cout]
                y = jnp.dot(pm, y.astype(jnp.bfloat16),
                            preferred_element_type=jnp.float32)

            # Re-zero the margin columns (zero padding for the next conv) with a
            # precomputed 0/1 row mask: one vmul.  The last block's margins are never
            # read again, so it skips the mask.
            if i < nblk - 1:
                y = y * c_ref[mask_offs[i]: mask_offs[i] + 1, 0:wn]

            h = y

        # Final Linear over the time axis, per batch segment (static slices, margins skipped).
        lw = w_ref[lin_w_off: lin_w_off + L, 0:out_feat]          # (L, out_feat) bf16
        lb = c_ref[lb_off: lb_off + 1, 0:out_feat]                # (1, out_feat) f32
        h16 = h.astype(jnp.bfloat16)
        for b in range(B):
            hb = h16[:, b * Wm: b * Wm + L]                       # (C_final, L)
            o_ref[b] = (jnp.dot(hb, lw, preferred_element_type=jnp.float32)
                        + lb).astype(o_ref.dtype)

    return kernel


# ----------------------------------------------------------------------------------- #
# Wrapper: parameter packing (2 constant slabs) + single pallas_call, one grid step
# ----------------------------------------------------------------------------------- #
def conv_res_like_forward(x, params, cfg):
    pool = tuple(cfg["pool"])
    pads = list(cfg["padding"])
    Ks = list(cfg["kernels"])
    for K, p in zip(Ks, pads):
        assert 2 * p == K - 1, "residual add requires length-preserving main conv"
    has_pool = pool != (1, 1)

    # ---- input: (B, L, F) -> (F, B*(L+2P)), per-batch zero margins of width P ----
    h0 = jnp.transpose(x, (0, 2, 1)).astype(jnp.float32)          # (B, Cin0, L)
    B, cin0, L = h0.shape
    P = sum(pads)
    Wm = L + 2 * P                                                # per-batch segment stride
    Wtot = B * Wm
    xp = jnp.pad(h0, ((0, 0), (0, 0), (P, P)))                    # (B, Cin0, Wm)
    x_flat = jnp.transpose(xp, (1, 0, 2)).reshape(cin0, Wtot)     # (Cin0, Wtot)

    blocks = params["blocks"]
    nblk = len(blocks)
    couts = [b["w"].shape[0] for b in blocks]
    cins = [b["w"].shape[1] for b in blocks]
    cpools = [((c - pool[0]) // pool[1] + 1) if has_pool else c for c in couts]
    c_final = cpools[-1]

    out_feat, lw_in = params["lin_w"].shape
    assert lw_in == L, "final Linear must contract the (pool-preserved) time axis"

    # h widths before each block / after the last block (valid-conv shrinks by 2p).
    Ws = [Wtot]
    for p in pads:
        Ws.append(Ws[-1] - 2 * p)

    # ---- w_all: every MXU operand packed into ONE bf16 slab ----
    max_c = max(cins + [out_feat] + (couts if has_pool else []))
    w_chunks, w_offs, pm_offs = [], [], []
    row = 0
    for i, blk in enumerate(blocks):
        K, cout, cin = Ks[i], couts[i], cins[i]
        taps = jnp.transpose(blk["w"], (2, 0, 1)).reshape(K * cout, cin)   # tap-major rows
        stack = jnp.concatenate([taps, blk["wr"]], axis=0)                 # ((K+1)*Cout, Cin)
        w_chunks.append(jnp.pad(stack, ((0, 0), (0, max_c - cin))))
        w_offs.append(row)
        row += (K + 1) * cout
    if has_pool:
        pk, ps = pool
        for i, cout in enumerate(couts):
            pm = np.zeros((cpools[i], cout), np.float32)
            for j in range(cpools[i]):
                pm[j, j * ps: j * ps + pk] = 1.0 / pk
            w_chunks.append(jnp.asarray(np.pad(pm, ((0, 0), (0, max_c - cout)))))
            pm_offs.append(row)
            row += cpools[i]
    lin_w_t = jnp.transpose(params["lin_w"]).astype(jnp.float32)           # (L, out_feat)
    w_chunks.append(jnp.pad(lin_w_t, ((0, 0), (0, max_c - out_feat))))
    lin_w_off = row
    row += L
    # bf16 storage == what DEFAULT-precision MXU truncation would do to f32 operands.
    w_all = jnp.concatenate(w_chunks, axis=0).astype(jnp.bfloat16)

    # ---- c_all: BN scale / biases (columns), margin masks + Linear bias (rows), ONE f32 slab ----
    cmax = max(Wtot, out_feat)
    c_chunks, c_offs = [], []
    row = 0
    for i, blk in enumerate(blocks):
        cout = couts[i]
        s = lax.rsqrt(blk["var"] + EPS) * blk["g"]                         # BN scale
        bmain = (blk["b"] - blk["mu"]) * s + blk["beta"]                   # BN-folded conv bias
        col = jnp.concatenate([s, bmain, blk["br"]]).reshape(3 * cout, 1)
        c_chunks.append(jnp.pad(col.astype(jnp.float32), ((0, 0), (0, cmax - 1))))
        c_offs.append(row)
        row += 3 * cout
    mask_offs = []
    off = P
    for i in range(nblk - 1):
        off -= pads[i]                                 # valid-window start after block i
        m = np.zeros((1, cmax), np.float32)
        for b in range(B):
            m[0, b * Wm + off: b * Wm + off + L] = 1.0
        c_chunks.append(jnp.asarray(m))
        mask_offs.append(row)
        row += 1
    lb_off = row
    row += 1
    c_chunks.append(jnp.pad(params["lin_b"].reshape(1, out_feat).astype(jnp.float32),
                            ((0, 0), (0, cmax - out_feat))))
    c_all = jnp.concatenate(c_chunks, axis=0).astype(jnp.float32)

    kernel = _make_fused_kernel(
        B=B, L=L, Wm=Wm, Ws=tuple(Ws), pads=tuple(pads), kernels=tuple(Ks),
        couts=tuple(couts), cins=tuple(cins), cpools=tuple(cpools), has_pool=has_pool,
        out_feat=out_feat, w_offs=tuple(w_offs), pm_offs=tuple(pm_offs),
        lin_w_off=lin_w_off, c_offs=tuple(c_offs), mask_offs=tuple(mask_offs),
        lb_off=lb_off)

    # Single grid step: batch is folded onto the lane axis, so there is no per-batch grid
    # overhead and constants are DMA'd exactly once (review: v5e/v6e are single-TC; on v7x
    # the body is latency-bound, so one fused step matches 2-way core sharding here).
    return pl.pallas_call(
        kernel,
        grid=(1,),
        in_specs=[
            pl.BlockSpec((cin0, Wtot), lambda i: (0, 0)),
            pl.BlockSpec(w_all.shape, lambda i: (0, 0)),
            pl.BlockSpec(c_all.shape, lambda i: (0, 0)),
        ],
        out_specs=pl.BlockSpec((B, c_final, out_feat), lambda i: (0, 0, 0)),
        out_shape=jax.ShapeDtypeStruct((B, c_final, out_feat), jnp.float32),
        compiler_params=pltpu.CompilerParams(dimension_semantics=("arbitrary",)),
    )(x_flat, w_all, c_all)


# ----------------------------------------------------------------------------------- #
# Pure-JAX reference (PyTorch module in eval mode).  MXU operands are explicitly rounded
# to bf16 with f32 accumulation -- the same arithmetic the Pallas kernel (and XLA's
# DEFAULT TPU matmul precision) uses -- so the comparison is precision-deterministic.
# ----------------------------------------------------------------------------------- #
def conv_res_like_reference(x, params, cfg):
    dn = ("NCH", "OIH", "NCH")
    f32, bf = jnp.float32, jnp.bfloat16
    h = jnp.transpose(x, (0, 2, 1)).astype(f32)
    for blk, pad in zip(params["blocks"], cfg["padding"]):
        conv = lax.conv_general_dilated(
            h.astype(bf), blk["w"].astype(bf), (1,), [(pad, pad)],
            dimension_numbers=dn, preferred_element_type=f32) + blk["b"][None, :, None]
        inv = lax.rsqrt(blk["var"][None, :, None] + EPS)
        main = jnp.maximum((conv - blk["mu"][None, :, None]) * inv *
                           blk["g"][None, :, None] + blk["beta"][None, :, None], 0.0)
        res = lax.conv_general_dilated(
            h.astype(bf), blk["wr"][:, :, None].astype(bf), (1,), [(0, 0)],
            dimension_numbers=dn, preferred_element_type=f32) + blk["br"][None, :, None]
        y = main + jnp.maximum(res, 0.0)
        pk, ps = cfg["pool"]
        cp = (y.shape[1] - pk) // ps + 1
        h = jnp.stack([y[:, j * ps:j * ps + pk, :].mean(axis=1) for j in range(cp)], axis=1)
    if h.shape[2] == 1:
        h = h[:, :, 0]       # module squeezes when the time axis collapses to 1
    return (jnp.einsum("...l,ol->...o", h.astype(bf), params["lin_w"].astype(bf),
                       preferred_element_type=f32) + params["lin_b"])


def init_block(key, cin, cout, k):
    ks = jax.random.split(key, 8)
    return dict(
        w=0.2 * jax.random.normal(ks[0], (cout, cin, k), jnp.float32),
        b=0.1 * jax.random.normal(ks[1], (cout,), jnp.float32),
        g=1.0 + 0.1 * jax.random.normal(ks[2], (cout,), jnp.float32),
        beta=0.1 * jax.random.normal(ks[3], (cout,), jnp.float32),
        mu=0.1 * jax.random.normal(ks[4], (cout,), jnp.float32),
        var=0.5 + jax.random.uniform(ks[5], (cout,), jnp.float32),
        wr=0.2 * jax.random.normal(ks[6], (cout, cin), jnp.float32),
        br=0.1 * jax.random.normal(ks[7], (cout,), jnp.float32),
    )


if __name__ == "__main__":
    # cfg.data.nfeats=4, seq(lookback)=32, cfg.data.lseq=8
    # params.conv: n_channels=[8,16,32], kernels=[3,3,3], padding=[1,1,1],
    #              pool=(1,1), dropout=0.1 (eval -> identity)
    cfg = dict(nfeats=4, seq=32, lseq=8,
               n_channels=[8, 16, 32], kernels=[3, 3, 3], padding=[1, 1, 1],
               pool=(1, 1), dropout=0.1)
    B = 2

    key = jax.random.PRNGKey(0)
    kx, k0, k1, k2, kw, kb = jax.random.split(key, 6)
    chans = [cfg["nfeats"]] + cfg["n_channels"]
    params = dict(
        blocks=[init_block(k, chans[i], chans[i + 1], cfg["kernels"][i])
                for i, k in enumerate([k0, k1, k2])],
        # Linear contracts the time axis (length seq after the (1,1) pools).
        lin_w=0.2 * jax.random.normal(kw, (cfg["lseq"], cfg["seq"]), jnp.float32),
        lin_b=0.1 * jax.random.normal(kb, (cfg["lseq"],), jnp.float32),
    )

    x = jax.random.normal(kx, (B, cfg["seq"], cfg["nfeats"]), jnp.float32)

    out = jax.jit(lambda xx: conv_res_like_forward(xx, params, cfg))(x)
    out = jax.block_until_ready(out)

    ref = conv_res_like_reference(x, params, cfg)
    assert out.shape == (B, cfg["n_channels"][-1], cfg["lseq"]), out.shape
    err = float(jnp.max(jnp.abs(out - ref)))
    # Both sides use bf16 MXU operands with f32 accumulation on identical operand values,
    # so the residual error is f32 accumulation-order noise (<<5e-3); structural bugs
    # would produce O(1) errors.
    if err < 5e-3:
        print("KERNEL_OK")
    else:
        print(f"MISMATCH max_abs_err={err}")
</pallas_src>

<mosaic_0001>
module attributes {stable_mosaic.version = 11 : i64} {
  func.func @kernel(%arg0: i32, %arg1: memref<4x76xf32, #tpu.memory_space<vmem>>, %arg2: memref<256x16xbf16, #tpu.memory_space<vmem>>, %arg3: memref<171x76xf32, #tpu.memory_space<vmem>>, %arg4: memref<2x32x8xf32, #tpu.memory_space<vmem>>) attributes {dimension_semantics = [#tpu.dimension_semantics<arbitrary>], iteration_bounds = array<i64: 1>, scalar_prefetch = 0 : i64, scratch_operands = 0 : i64, tpu.core_type = #tpu.core_type<tc>, window_params = [{pipeline_mode = #tpu.pipeline_mode<synchronous>, transform_indices = @transform_0, window_bounds = array<i64: 4, 76>}, {pipeline_mode = #tpu.pipeline_mode<synchronous>, transform_indices = @transform_1, window_bounds = array<i64: 256, 16>}, {pipeline_mode = #tpu.pipeline_mode<synchronous>, transform_indices = @transform_2, window_bounds = array<i64: 171, 76>}, {pipeline_mode = #tpu.pipeline_mode<synchronous>, transform_indices = @transform_3, window_bounds = array<i64: 2, 32, 8>}]} {
    %c0 = arith.constant 0 : index
    %c0_0 = arith.constant 0 : index
    %0 = vector.load %arg1[%c0, %c0_0] : memref<4x76xf32, #tpu.memory_space<vmem>>, vector<4x76xf32>
    %c0_1 = arith.constant 0 : index
    %c0_2 = arith.constant 0 : index
    %1 = vector.load %arg2[%c0_1, %c0_2] : memref<256x16xbf16, #tpu.memory_space<vmem>>, vector<32x4xbf16>
    %2 = arith.truncf %0 : vector<4x76xf32> to vector<4x76xbf16>
    %cst = arith.constant dense<0.000000e+00> : vector<32x76xf32>
    %3 = tpu.matmul %1, %2, %cst {dimension_numbers = #tpu.dot_dimension_numbers<[1], [0], [0], [1], [0, 0, 1, 1], [], []>} : vector<32x4xbf16>, vector<4x76xbf16>, vector<32x76xf32> -> vector<32x76xf32>
    %4 = vector.extract_strided_slice %3 {offsets = [0, 0], sizes = [8, 74], strides = [1, 1]} : vector<32x76xf32> to vector<8x74xf32>
    %5 = vector.extract_strided_slice %3 {offsets = [8, 1], sizes = [8, 74], strides = [1, 1]} : vector<32x76xf32> to vector<8x74xf32>
    %6 = arith.addf %4, %5 : vector<8x74xf32>
    %7 = vector.extract_strided_slice %3 {offsets = [16, 2], sizes = [8, 74], strides = [1, 1]} : vector<32x76xf32> to vector<8x74xf32>
    %8 = arith.addf %6, %7 : vector<8x74xf32>
    %9 = vector.extract_strided_slice %3 {offsets = [24, 1], sizes = [8, 74], strides = [1, 1]} : vector<32x76xf32> to vector<8x74xf32>
    %c0_3 = arith.constant 0 : index
    %c0_4 = arith.constant 0 : index
    %10 = vector.load %arg3[%c0_3, %c0_4] : memref<171x76xf32, #tpu.memory_space<vmem>>, vector<8x1xf32>
    %c8 = arith.constant 8 : index
    %c0_5 = arith.constant 0 : index
    %11 = vector.load %arg3[%c8, %c0_5] : memref<171x76xf32, #tpu.memory_space<vmem>>, vector<8x1xf32>
    %c16 = arith.constant 16 : index
    %c0_6 = arith.constant 0 : index
    %12 = vector.load %arg3[%c16, %c0_6] : memref<171x76xf32, #tpu.memory_space<vmem>>, vector<8x1xf32>
    %13 = vector.broadcast %10 : vector<8x1xf32> to vector<8x74xf32>
    %14 = arith.mulf %8, %13 : vector<8x74xf32>
    %15 = vector.broadcast %11 : vector<8x1xf32> to vector<8x74xf32>
    %16 = arith.addf %14, %15 : vector<8x74xf32>
    %cst_7 = arith.constant 0.000000e+00 : f32
    %17 = vector.broadcast %cst_7 : f32 to vector<8x74xf32>
    %18 = arith.maximumf %16, %17 : vector<8x74xf32>
    %19 = vector.broadcast %12 : vector<8x1xf32> to vector<8x74xf32>
    %20 = arith.addf %9, %19 : vector<8x74xf32>
    %cst_8 = arith.constant 0.000000e+00 : f32
    %21 = vector.broadcast %cst_8 : f32 to vector<8x74xf32>
    %22 = arith.maximumf %20, %21 : vector<8x74xf32>
    %23 = arith.addf %18, %22 : vector<8x74xf32>
    %c168 = arith.constant 168 : index
    %c0_9 = arith.constant 0 : index
    %24 = vector.load %arg3[%c168, %c0_9] : memref<171x76xf32, #tpu.memory_space<vmem>>, vector<1x74xf32>
    %25 = vector.broadcast %24 : vector<1x74xf32> to vector<8x74xf32>
    %26 = arith.mulf %23, %25 : vector<8x74xf32>
    %c32 = arith.constant 32 : index
    %c0_10 = arith.constant 0 : index
    %27 = vector.load %arg2[%c32, %c0_10] : memref<256x16xbf16, #tpu.memory_space<vmem>>, vector<64x8xbf16>
    %28 = arith.truncf %26 : vector<8x74xf32> to vector<8x74xbf16>
    %cst_11 = arith.constant dense<0.000000e+00> : vector<64x74xf32>
    %29 = tpu.matmul %27, %28, %cst_11 {dimension_numbers = #tpu.dot_dimension_numbers<[1], [0], [0], [1], [0, 0, 1, 1], [], []>} : vector<64x8xbf16>, vector<8x74xbf16>, vector<64x74xf32> -> vector<64x74xf32>
    %30 = vector.extract_strided_slice %29 {offsets = [0, 0], sizes = [16, 72], strides = [1, 1]} : vector<64x74xf32> to vector<16x72xf32>
    %31 = vector.extract_strided_slice %29 {offsets = [16, 1], sizes = [16, 72], strides = [1, 1]} : vector<64x74xf32> to vector<16x72xf32>
    %32 = arith.addf %30, %31 : vector<16x72xf32>
    %33 = vector.extract_strided_slice %29 {offsets = [32, 2], sizes = [16, 72], strides = [1, 1]} : vector<64x74xf32> to vector<16x72xf32>
    %34 = arith.addf %32, %33 : vector<16x72xf32>
    %35 = vector.extract_strided_slice %29 {offsets = [48, 1], sizes = [16, 72], strides = [1, 1]} : vector<64x74xf32> to vector<16x72xf32>
    %c24 = arith.constant 24 : index
    %c0_12 = arith.constant 0 : index
    %36 = vector.load %arg3[%c24, %c0_12] : memref<171x76xf32, #tpu.memory_space<vmem>>, vector<16x1xf32>
    %c40 = arith.constant 40 : index
    %c0_13 = arith.constant 0 : index
    %37 = vector.load %arg3[%c40, %c0_13] : memref<171x76xf32, #tpu.memory_space<vmem>>, vector<16x1xf32>
    %c56 = arith.constant 56 : index
    %c0_14 = arith.constant 0 : index
    %38 = vector.load %arg3[%c56, %c0_14] : memref<171x76xf32, #tpu.memory_space<vmem>>, vector<16x1xf32>
    %39 = vector.broadcast %36 : vector<16x1xf32> to vector<16x72xf32>
    %40 = arith.mulf %34, %39 : vector<16x72xf32>
    %41 = vector.broadcast %37 : vector<16x1xf32> to vector<16x72xf32>
    %42 = arith.addf %40, %41 : vector<16x72xf32>
    %cst_15 = arith.constant 0.000000e+00 : f32
    %43 = vector.broadcast %cst_15 : f32 to vector<16x72xf32>
    %44 = arith.maximumf %42, %43 : vector<16x72xf32>
    %45 = vector.broadcast %38 : vector<16x1xf32> to vector<16x72xf32>
    %46 = arith.addf %35, %45 : vector<16x72xf32>
    %cst_16 = arith.constant 0.000000e+00 : f32
    %47 = vector.broadcast %cst_16 : f32 to vector<16x72xf32>
    %48 = arith.maximumf %46, %47 : vector<16x72xf32>
    %49 = arith.addf %44, %48 : vector<16x72xf32>
    %c169 = arith.constant 169 : index
    %c0_17 = arith.constant 0 : index
    %50 = vector.load %arg3[%c169, %c0_17] : memref<171x76xf32, #tpu.memory_space<vmem>>, vector<1x72xf32>
    %51 = vector.broadcast %50 : vector<1x72xf32> to vector<16x72xf32>
    %52 = arith.mulf %49, %51 : vector<16x72xf32>
    %c96 = arith.constant 96 : index
    %c0_18 = arith.constant 0 : index
    %53 = vector.load %arg2[%c96, %c0_18] : memref<256x16xbf16, #tpu.memory_space<vmem>>, vector<128x16xbf16>
    %54 = arith.truncf %52 : vector<16x72xf32> to vector<16x72xbf16>
    %cst_19 = arith.constant dense<0.000000e+00> : vector<128x72xf32>
    %55 = tpu.matmul %53, %54, %cst_19 {dimension_numbers = #tpu.dot_dimension_numbers<[1], [0], [0], [1], [0, 0, 1, 1], [], []>} : vector<128x16xbf16>, vector<16x72xbf16>, vector<128x72xf32> -> vector<128x72xf32>
    %56 = vector.extract_strided_slice %55 {offsets = [0, 0], sizes = [32, 70], strides = [1, 1]} : vector<128x72xf32> to vector<32x70xf32>
    %57 = vector.extract_strided_slice %55 {offsets = [32, 1], sizes = [32, 70], strides = [1, 1]} : vector<128x72xf32> to vector<32x70xf32>
    %58 = arith.addf %56, %57 : vector<32x70xf32>
    %59 = vector.extract_strided_slice %55 {offsets = [64, 2], sizes = [32, 70], strides = [1, 1]} : vector<128x72xf32> to vector<32x70xf32>
    %60 = arith.addf %58, %59 : vector<32x70xf32>
    %61 = vector.extract_strided_slice %55 {offsets = [96, 1], sizes = [32, 70], strides = [1, 1]} : vector<128x72xf32> to vector<32x70xf32>
    %c72 = arith.constant 72 : index
    %c0_20 = arith.constant 0 : index
    %62 = vector.load %arg3[%c72, %c0_20] : memref<171x76xf32, #tpu.memory_space<vmem>>, vector<32x1xf32>
    %c104 = arith.constant 104 : index
    %c0_21 = arith.constant 0 : index
    %63 = vector.load %arg3[%c104, %c0_21] : memref<171x76xf32, #tpu.memory_space<vmem>>, vector<32x1xf32>
    %c136 = arith.constant 136 : index
    %c0_22 = arith.constant 0 : index
    %64 = vector.load %arg3[%c136, %c0_22] : memref<171x76xf32, #tpu.memory_space<vmem>>, vector<32x1xf32>
    %65 = vector.broadcast %62 : vector<32x1xf32> to vector<32x70xf32>
    %66 = arith.mulf %60, %65 : vector<32x70xf32>
    %67 = vector.broadcast %63 : vector<32x1xf32> to vector<32x70xf32>
    %68 = arith.addf %66, %67 : vector<32x70xf32>
    %cst_23 = arith.constant 0.000000e+00 : f32
    %69 = vector.broadcast %cst_23 : f32 to vector<32x70xf32>
    %70 = arith.maximumf %68, %69 : vector<32x70xf32>
    %71 = vector.broadcast %64 : vector<32x1xf32> to vector<32x70xf32>
    %72 = arith.addf %61, %71 : vector<32x70xf32>
    %cst_24 = arith.constant 0.000000e+00 : f32
    %73 = vector.broadcast %cst_24 : f32 to vector<32x70xf32>
    %74 = arith.maximumf %72, %73 : vector<32x70xf32>
    %75 = arith.addf %70, %74 : vector<32x70xf32>
    %c224 = arith.constant 224 : index
    %c0_25 = arith.constant 0 : index
    %76 = vector.load %arg2[%c224, %c0_25] : memref<256x16xbf16, #tpu.memory_space<vmem>>, vector<32x8xbf16>
    %c170 = arith.constant 170 : index
    %c0_26 = arith.constant 0 : index
    %77 = vector.load %arg3[%c170, %c0_26] : memref<171x76xf32, #tpu.memory_space<vmem>>, vector<1x8xf32>
    %78 = arith.truncf %75 : vector<32x70xf32> to vector<32x70xbf16>
    %79 = vector.extract_strided_slice %78 {offsets = [0, 0], sizes = [32, 32], strides = [1, 1]} : vector<32x70xbf16> to vector<32x32xbf16>
    %cst_27 = arith.constant dense<0.000000e+00> : vector<32x8xf32>
    %80 = tpu.matmul %79, %76, %cst_27 {dimension_numbers = #tpu.dot_dimension_numbers<[1], [0], [0], [1], [0, 0, 1, 1], [], []>} : vector<32x32xbf16>, vector<32x8xbf16>, vector<32x8xf32> -> vector<32x8xf32>
    %81 = vector.broadcast %77 : vector<1x8xf32> to vector<32x8xf32>
    %82 = arith.addf %80, %81 : vector<32x8xf32>
    %c0_28 = arith.constant 0 : index
    %c0_29 = arith.constant 0 : index
    %c0_30 = arith.constant 0 : index
    %83 = vector.load %arg4[%c0_28, %c0_29, %c0_30] : memref<2x32x8xf32, #tpu.memory_space<vmem>>, vector<1x32x8xf32>
    %84 = vector.shape_cast %83 : vector<1x32x8xf32> to vector<32x8xf32>
    %85 = vector.shape_cast %82 : vector<32x8xf32> to vector<1x32x8xf32>
    tpu.vector_store %arg4[%c0_28, %c0_29, %c0_30], %85 {strides = array<i32>} : memref<2x32x8xf32, #tpu.memory_space<vmem>>, vector<1x32x8xf32>,
    %86 = vector.extract_strided_slice %78 {offsets = [0, 38], sizes = [32, 32], strides = [1, 1]} : vector<32x70xbf16> to vector<32x32xbf16>
    %cst_31 = arith.constant dense<0.000000e+00> : vector<32x8xf32>
    %87 = tpu.matmul %86, %76, %cst_31 {dimension_numbers = #tpu.dot_dimension_numbers<[1], [0], [0], [1], [0, 0, 1, 1], [], []>} : vector<32x32xbf16>, vector<32x8xbf16>, vector<32x8xf32> -> vector<32x8xf32>
    %88 = vector.broadcast %77 : vector<1x8xf32> to vector<32x8xf32>
    %89 = arith.addf %87, %88 : vector<32x8xf32>
    %c1 = arith.constant 1 : index
    %c0_32 = arith.constant 0 : index
    %c0_33 = arith.constant 0 : index
    %90 = vector.load %arg4[%c1, %c0_32, %c0_33] : memref<2x32x8xf32, #tpu.memory_space<vmem>>, vector<1x32x8xf32>
    %91 = vector.shape_cast %90 : vector<1x32x8xf32> to vector<32x8xf32>
    %92 = vector.shape_cast %89 : vector<32x8xf32> to vector<1x32x8xf32>
    tpu.vector_store %arg4[%c1, %c0_32, %c0_33], %92 {strides = array<i32>} : memref<2x32x8xf32, #tpu.memory_space<vmem>>, vector<1x32x8xf32>,
    return
  }
  func.func @transform_0(%arg0: i32) -> (i32, i32) {
    %c0_i32 = arith.constant 0 : i32
    %c0_i32_0 = arith.constant 0 : i32
    %c0_i32_1 = arith.constant 0 : i32
    return %c0_i32, %c0_i32_0 : i32, i32
  }
  func.func @transform_1(%arg0: i32) -> (i32, i32) {
    %c0_i32 = arith.constant 0 : i32
    %c0_i32_0 = arith.constant 0 : i32
    %c0_i32_1 = arith.constant 0 : i32
    return %c0_i32, %c0_i32_0 : i32, i32
  }
  func.func @transform_2(%arg0: i32) -> (i32, i32) {
    %c0_i32 = arith.constant 0 : i32
    %c0_i32_0 = arith.constant 0 : i32
    %c0_i32_1 = arith.constant 0 : i32
    return %c0_i32, %c0_i32_0 : i32, i32
  }
  func.func @transform_3(%arg0: i32) -> (i32, i32, i32) {
    %c0_i32 = arith.constant 0 : i32
    %c0_i32_0 = arith.constant 0 : i32
    %c0_i32_1 = arith.constant 0 : i32
    %c0_i32_2 = arith.constant 0 : i32
    return %c0_i32, %c0_i32_0, %c0_i32_1 : i32, i32, i32
  }
}

</mosaic_0001>

<llo_original>
// kernel: _lambda_.1
$region0: #{_lambda_.1}
  #allocation0 [shape = 'u32[]', space=smem, size = 0x4, offset = 0x4, fixed_abs, tag = 'smem constant byte address 0x4 - core index']
  #allocation1 [shape = 'u32[72,128]{1,0:T(1,128)}', space=vmem, size = 0x9000, scoped, tag = 'internal scratch']
  %s0 = inlined_call_operand.vmem [shape: f32[4,76], index: 0, kind: input, shape index: {}]
  %s1 = inlined_call_operand.hbm [shape: bf16[256,16], index: 1, kind: input, shape index: {}]
  %s2 = inlined_call_operand.hbm [shape: f32[171,76], index: 2, kind: input, shape index: {}]
  %s3 = inlined_call_operand.vmem [shape: f32[2,32,8], index: 3, kind: output, shape index: {}]
  %s4 = sld [smem:[#allocation0]]
  $region30: #{_lambda_.1} parent=0
    _
  %s6 = ssub.s32 1, %s4
  %s7 = scalar_select 0, %s6, %s4
  $region1: #{_lambda_.1} parent=0
    #allocation2 [shape = 'u8[65536]{0}', space=vmem, size = 0x10000, scoped, tag = 'input window, operand 1, single buffered']
    #allocation3 [shape = 's32[1]{0}', space=sflag, size = 0x4, scoped, tag = 'scoped memory for _lambda_.1']
    #allocation4 [shape = 'u8[90112]{0}', space=vmem, size = 0x16000, scoped, tag = 'input window, operand 2, single buffered']
    #allocation5 [shape = 's32[1]{0}', space=sflag, size = 0x4, scoped, tag = 'scoped memory for _lambda_.1']
    %8 = vsyncpa [#allocation3], 0
    %9 = vsyncpa [#allocation5], 0
    // Predicated region
    $region2: #{_lambda_.1} parent=1 // pred_check
      _
    $region3: #{_lambda_.1} parent=1 // pred_check_branch
      %11 = sbr.rel (0) target = $region5
    $region4: #{_lambda_.1} parent=1 // pred_region
      _
    $region5: #{_lambda_.1} parent=1 // pred_fallthru
      _
    // Predicated region
    $region6: #{_lambda_.1} parent=1 // pred_check
      _
    $region7: #{_lambda_.1} parent=1 // pred_check_branch
      %13 = sbr.rel (0) target = $region9
    $region8: #{_lambda_.1} parent=1 // pred_region
      %15 = vsyncadd [#allocation3], 0
      %s16 = sshll.u32 %s1, 4
      %s17 = int_to_ptr.hbm [resolvable:$true] %s16
      %s18 = sshll.u32 [#allocation2], 4
      %s19 = int_to_ptr.vmem [resolvable:$true] %s18
      %24 = dma.hbm_to_vmem [thread:$0]  %s17, 2048, %s19, [#allocation3], 64, 64, 4
    $region9: #{_lambda_.1} parent=1 // pred_fallthru
      _
    // Predicated region
    $region10: #{_lambda_.1} parent=1 // pred_check
      _
    $region11: #{_lambda_.1} parent=1 // pred_check_branch
      %26 = sbr.rel (0) target = $region13
    $region12: #{_lambda_.1} parent=1 // pred_region
      %28 = vsyncadd [#allocation5], 0
      %s29 = sshll.u32 %s2, 4
      %s30 = int_to_ptr.hbm [resolvable:$true] %s29
      %s31 = sshll.u32 [#allocation4], 4
      %s32 = int_to_ptr.vmem [resolvable:$true] %s31
      %37 = dma.hbm_to_vmem [thread:$0]  %s30, 2816, %s32, [#allocation5], 128, 128, 8
    $region13: #{_lambda_.1} parent=1 // pred_fallthru
      _
    // Predicated region
    $region14: #{_lambda_.1} parent=1 // pred_check
      _
    $region15: #{_lambda_.1} parent=1 // pred_check_branch
      %39 = sbr.rel (0) target = $region17
    $region16: #{_lambda_.1} parent=1 // pred_region
      %41 = dma.done [#allocation3], 2048
    $region17: #{_lambda_.1} parent=1 // pred_fallthru
      _
    // Predicated region
    $region18: #{_lambda_.1} parent=1 // pred_check
      _
    $region19: #{_lambda_.1} parent=1 // pred_check_branch
      %43 = sbr.rel (0) target = $region21
    $region20: #{_lambda_.1} parent=1 // pred_region
      %45 = dma.done [#allocation5], 2816
    $region21: #{_lambda_.1} parent=1 // pred_fallthru
      _
    %v47 = vld [vmem:[%s0] sm:$0xf]
    %v48 = vld [vmem:[#allocation2] sm:$0xf]
    %v49 = vld [vmem:[#allocation2 + $0x4] sm:$0xf]
    %v50 = vld [vmem:[#allocation2 + $0x8] sm:$0xf]
    %v51 = vld [vmem:[#allocation2 + $0xc] sm:$0xf]
    %v52 = vpack.c.bf16 %v47, %v47
    %v57 = vunpack.c.l.b16 %v48
    %v58 = vunpack.c.l.b16 %v49
    %v59 = vunpack.c.l.b16 %v50
    %v60 = vunpack.c.l.b16 %v51
    %v61 = vpack.c.b16 %v58, %v57
    %v62 = vpack.c.b16 %v60, %v59
    %vm63 = vcmask 31744
    %v65 = vsel %vm63, %v61, 0
    %v68 = vsel %vm63, %v62, 0
    %vm70 = vcmask 1041408
    %v72 = vsel %vm70, %v52, 0
    %74 = vmatpush.bf16.msra.mxu0 0
    %75 = vmatpush.bf16.msra.mxu0 0
    %76 = vmatpush.bf16.msra.mxu0 0
    %77 = vmatpush.bf16.msra.mxu0 0
    %78 = vmatpush.bf16.msra.mxu0 0
    %79 = vmatpush.bf16.msra.mxu0 0
    %80 = vmatpush.bf16.msra.mxu0 0
    %81 = vmatpush.bf16.msra.mxu0 %v72
    %82 = vmatmul.bf16.gmra.mxu0 %v65
    %v83 = vpop.f32.mrf.mxu0
    %v84 = vadd.f32 0.0, %v83
    %v85 = vpop.f32.mrf.mxu0
    %v86 = vadd.f32 0.0, %v85
    %87 = vmatmul.bf16.gmra.mxu0 %v68
    %v88 = vpop.f32.mrf.mxu0
    %v89 = vadd.f32 0.0, %v88
    %v90 = vpop.f32.mrf.mxu0
    %v91 = vadd.f32 0.0, %v90
    %92 = vdwg.mxu0
    %94 = vrot.lane.b32.xlu0 %v86, 127
    %v95 = vpop.permute.xlu0 %94
    %v97 = vadd.f32 %v84, %v95
    %99 = vrot.lane.b32.xlu0 %v89, 126
    %v100 = vpop.permute.xlu0 %99
    %v102 = vadd.f32 %v97, %v100
    %v103 = vld [vmem:[#allocation4] sm:$0xff]
    %v104 = vld [vmem:[#allocation4 + $0x8] sm:$0xff]
    %v105 = vld [vmem:[#allocation4 + $0x10] sm:$0xff]
    %107 = vset.pattern.permute.xlu0 0
    %108 = vperm.xlu0 %107, %v103
    %v109 = vpop.permute.xlu0 %108
    %v111 = vmul.f32 %v102, %v109
    %113 = vset.pattern.permute.xlu0 0
    %114 = vperm.xlu0 %113, %v104
    %v115 = vpop.permute.xlu0 %114
    %v117 = vadd.f32 %v111, %v115
    %v118 = vmax.f32 %v117, 0.0
    %120 = vset.pattern.permute.xlu0 0
    %121 = vperm.xlu0 %120, %v105
    %v122 = vpop.permute.xlu0 %121
    %v124 = vadd.f32 %v91, %v122
    %v125 = vmax.f32 %v124, 0.0
    %127 = vrot.lane.b32.xlu0 %v125, 127
    %v128 = vpop.permute.xlu0 %127
    %v130 = vadd.f32 %v118, %v128
    %v131 = vld [vmem:[#allocation4 + $0xa8] sm:$0x1]
    %v132 = vperm.slane %v131, 0
    %v133 = vmul.f32 %v130, %v132
    %v134 = vld [vmem:[#allocation2 + $0x10] sm:$0xf]
    %v135 = vld [vmem:[#allocation2 + $0x14] sm:$0xf]
    %v136 = vld [vmem:[#allocation2 + $0x18] sm:$0xf]
    %v137 = vld [vmem:[#allocation2 + $0x1c] sm:$0xf]
    %v138 = vld [vmem:[#allocation2 + $0x20] sm:$0xf]
    %v139 = vld [vmem:[#allocation2 + $0x24] sm:$0xf]
    %v140 = vld [vmem:[#allocation2 + $0x28] sm:$0xf]
    %v141 = vld [vmem:[#allocation2 + $0x2c] sm:$0xf]
    %v142 = vpack.c.bf16 %v133, %v133
    %v151 = vunpack.c.l.b16 %v134
    %v152 = vunpack.c.l.b16 %v135
    %v153 = vunpack.c.l.b16 %v136
    %v154 = vunpack.c.l.b16 %v137
    %v155 = vunpack.c.l.b16 %v138
    %v156 = vunpack.c.l.b16 %v139
    %v157 = vunpack.c.l.b16 %v140
    %v158 = vunpack.c.l.b16 %v141
    %v159 = vpack.c.b16 %v152, %v151
    %v160 = vpack.c.b16 %v154, %v153
    %v161 = vpack.c.b16 %v156, %v155
    %v162 = vpack.c.b16 %v158, %v157
    %vm163 = vcmask 64512
    %v165 = vsel %vm163, %v159, 0
    %v168 = vsel %vm163, %v160, 0
    %v171 = vsel %vm163, %v161, 0
    %v174 = vsel %vm163, %v162, 0
    %vm176 = vcmask 1043456
    %v178 = vsel %vm176, %v142, 0
    %180 = vmatpush.bf16.msra.mxu0 0
    %181 = vmatpush.bf16.msra.mxu0 0
    %182 = vmatpush.bf16.msra.mxu0 0
    %183 = vmatpush.bf16.msra.mxu0 0
    %184 = vmatpush.bf16.msra.mxu0 0
    %185 = vmatpush.bf16.msra.mxu0 0
    %186 = vmatpush.bf16.msra.mxu0 0
    %187 = vmatpush.bf16.msra.mxu0 %v178
    %188 = vmatmul.bf16.gmra.mxu0 %v165
    %v189 = vpop.f32.mrf.mxu0
    %v190 = vadd.f32 0.0, %v189
    %v191 = vpop.f32.mrf.mxu0
    %v192 = vadd.f32 0.0, %v191
    %193 = vmatmul.bf16.gmra.mxu0 %v168
    %v194 = vpop.f32.mrf.mxu0
    %v195 = vadd.f32 0.0, %v194
    %v196 = vpop.f32.mrf.mxu0
    %v197 = vadd.f32 0.0, %v196
    %198 = vmatmul.bf16.gmra.mxu0 %v171
    %v199 = vpop.f32.mrf.mxu0
    %v200 = vadd.f32 0.0, %v199
    %v201 = vpop.f32.mrf.mxu0
    %v202 = vadd.f32 0.0, %v201
    %203 = vmatmul.bf16.gmra.mxu0 %v174
    %v204 = vpop.f32.mrf.mxu0
    %v205 = vadd.f32 0.0, %v204
    %v206 = vpop.f32.mrf.mxu0
    %v207 = vadd.f32 0.0, %v206
    %208 = vdwg.mxu0
    %211 = vrot.lane.b32.xlu0 %v195, 127
    %v212 = vpop.permute.xlu0 %211
    %213 = vrot.lane.b32.xlu0 %v197, 127
    %v214 = vpop.permute.xlu0 %213
    %v217 = vadd.f32 %v190, %v212
    %v218 = vadd.f32 %v192, %v214
    %221 = vrot.lane.b32.xlu0 %v200, 126
    %v222 = vpop.permute.xlu0 %221
    %223 = vrot.lane.b32.xlu0 %v202, 126
    %v224 = vpop.permute.xlu0 %223
    %v227 = vadd.f32 %v217, %v222
    %v228 = vadd.f32 %v218, %v224
    %v229 = vld [vmem:[#allocation4 + $0x18] sm:$0xff]
    %v230 = vld [vmem:[#allocation4 + $0x20] sm:$0xff]
    %v231 = vld [vmem:[#allocation4 + $0x28] sm:$0xff]
    %v232 = vld [vmem:[#allocation4 + $0x30] sm:$0xff]
    %v233 = vld [vmem:[#allocation4 + $0x38] sm:$0xff]
    %v234 = vld [vmem:[#allocation4 + $0x40] sm:$0xff]
    %236 = vset.pattern.permute.xlu0 0
    %237 = vperm.xlu0 %236, %v229
    %v238 = vpop.permute.xlu0 %237
    %241 = vset.pattern.permute.xlu0 0
    %242 = vperm.xlu0 %241, %v230
    %v243 = vpop.permute.xlu0 %242
    %v245 = vmul.f32 %v227, %v238
    %v246 = vmul.f32 %v228, %v243
    %248 = vset.pattern.permute.xlu0 0
    %249 = vperm.xlu0 %248, %v231
    %v250 = vpop.permute.xlu0 %249
    %253 = vset.pattern.permute.xlu0 0
    %254 = vperm.xlu0 %253, %v232
    %v255 = vpop.permute.xlu0 %254
    %v257 = vadd.f32 %v245, %v250
    %v258 = vadd.f32 %v246, %v255
    %v259 = vmax.f32 %v257, 0.0
    %v260 = vmax.f32 %v258, 0.0
    %262 = vset.pattern.permute.xlu0 0
    %263 = vperm.xlu0 %262, %v233
    %v264 = vpop.permute.xlu0 %263
    %267 = vset.pattern.permute.xlu0 0
    %268 = vperm.xlu0 %267, %v234
    %v269 = vpop.permute.xlu0 %268
    %v271 = vadd.f32 %v205, %v264
    %v272 = vadd.f32 %v207, %v269
    %v273 = vmax.f32 %v271, 0.0
    %v274 = vmax.f32 %v272, 0.0
    %277 = vrot.lane.b32.xlu0 %v273, 127
    %v278 = vpop.permute.xlu0 %277
    %279 = vrot.lane.b32.xlu0 %v274, 127
    %v280 = vpop.permute.xlu0 %279
    %v283 = vadd.f32 %v259, %v278
    %v284 = vadd.f32 %v260, %v280
    %v285 = vld [vmem:[#allocation4 + $0xa9] sm:$0x1]
    %v286 = vperm.slane %v285, 0
    %v287 = vmul.f32 %v283, %v286
    %v288 = vmul.f32 %v284, %v286
    %v289 = vld [vmem:[#allocation2 + $0x30] sm:$0xf]
    %v290 = vld [vmem:[#allocation2 + $0x34] sm:$0xf]
    %v291 = vld [vmem:[#allocation2 + $0x38] sm:$0xf]
    %v292 = vld [vmem:[#allocation2 + $0x3c] sm:$0xf]
    %v293 = vld [vmem:[#allocation2 + $0x40] sm:$0xf]
    %v294 = vld [vmem:[#allocation2 + $0x44] sm:$0xf]
    %v295 = vld [vmem:[#allocation2 + $0x48] sm:$0xf]
    %v296 = vld [vmem:[#allocation2 + $0x4c] sm:$0xf]
    %v297 = vld [vmem:[#allocation2 + $0x50] sm:$0xf]
    %v298 = vld [vmem:[#allocation2 + $0x54] sm:$0xf]
    %v299 = vld [vmem:[#allocation2 + $0x58] sm:$0xf]
    %v300 = vld [vmem:[#allocation2 + $0x5c] sm:$0xf]
    %v301 = vld [vmem:[#allocation2 + $0x60] sm:$0xf]
    %v302 = vld [vmem:[#allocation2 + $0x64] sm:$0xf]
    %v303 = vld [vmem:[#allocation2 + $0x68] sm:$0xf]
    %v304 = vld [vmem:[#allocation2 + $0x6c] sm:$0xf]
    %v305 = vpack.c.bf16 %v288, %v287
    %v322 = vunpack.c.l.b16 %v289
    %v323 = vunpack.c.l.b16 %v290
    %v324 = vunpack.c.l.b16 %v291
    %v325 = vunpack.c.l.b16 %v292
    %v326 = vunpack.c.l.b16 %v293
    %v327 = vunpack.c.l.b16 %v294
    %v328 = vunpack.c.l.b16 %v295
    %v329 = vunpack.c.l.b16 %v296
    %v330 = vunpack.c.l.b16 %v297
    %v331 = vunpack.c.l.b16 %v298
    %v332 = vunpack.c.l.b16 %v299
    %v333 = vunpack.c.l.b16 %v300
    %v334 = vunpack.c.l.b16 %v301
    %v335 = vunpack.c.l.b16 %v302
    %v336 = vunpack.c.l.b16 %v303
    %v337 = vunpack.c.l.b16 %v304
    %v338 = vpack.c.b16 %v323, %v322
    %v339 = vpack.c.b16 %v325, %v324
    %v340 = vpack.c.b16 %v327, %v326
    %v341 = vpack.c.b16 %v329, %v328
    %v342 = vpack.c.b16 %v331, %v330
    %v343 = vpack.c.b16 %v333, %v332
    %v344 = vpack.c.b16 %v335, %v334
    %v345 = vpack.c.b16 %v337, %v336
    %vm346 = vcmask 130048
    %v348 = vsel %vm346, %v338, 0
    %v351 = vsel %vm346, %v339, 0
    %v354 = vsel %vm346, %v340, 0
    %v357 = vsel %vm346, %v341, 0
    %v360 = vsel %vm346, %v342, 0
    %v363 = vsel %vm346, %v343, 0
    %v366 = vsel %vm346, %v344, 0
    %v369 = vsel %vm346, %v345, 0
    %371 = vmatpush.bf16.msra.mxu0 0
    %372 = vmatpush.bf16.msra.mxu0 0
    %373 = vmatpush.bf16.msra.mxu0 0
    %374 = vmatpush.bf16.msra.mxu0 0
    %375 = vmatpush.bf16.msra.mxu0 0
    %376 = vmatpush.bf16.msra.mxu0 0
    %377 = vmatpush.bf16.msra.mxu0 0
    %378 = vmatpush.bf16.msra.mxu0 %v305
    %379 = vmatmul.bf16.gmra.mxu0 %v348
    %v380 = vpop.f32.mrf.mxu0
    %v381 = vadd.f32 0.0, %v380
    %v382 = vpop.f32.mrf.mxu0
    %v383 = vadd.f32 0.0, %v382
    %384 = vmatmul.bf16.gmra.mxu0 %v351
    %v385 = vpop.f32.mrf.mxu0
    %v386 = vadd.f32 0.0, %v385
    %v387 = vpop.f32.mrf.mxu0
    %v388 = vadd.f32 0.0, %v387
    %389 = vmatmul.bf16.gmra.mxu0 %v354
    %v390 = vpop.f32.mrf.mxu0
    %v391 = vadd.f32 0.0, %v390
    %v392 = vpop.f32.mrf.mxu0
    %v393 = vadd.f32 0.0, %v392
    %394 = vmatmul.bf16.gmra.mxu0 %v357
    %v395 = vpop.f32.mrf.mxu0
    %v396 = vadd.f32 0.0, %v395
    %v397 = vpop.f32.mrf.mxu0
    %v398 = vadd.f32 0.0, %v397
    %399 = vmatmul.bf16.gmra.mxu0 %v360
    %v400 = vpop.f32.mrf.mxu0
    %v401 = vadd.f32 0.0, %v400
    %v402 = vpop.f32.mrf.mxu0
    %v403 = vadd.f32 0.0, %v402
    %404 = vmatmul.bf16.gmra.mxu0 %v363
    %v405 = vpop.f32.mrf.mxu0
    %v406 = vadd.f32 0.0, %v405
    %v407 = vpop.f32.mrf.mxu0
    %v408 = vadd.f32 0.0, %v407
    %409 = vmatmul.bf16.gmra.mxu0 %v366
    %v410 = vpop.f32.mrf.mxu0
    %v411 = vadd.f32 0.0, %v410
    %v412 = vpop.f32.mrf.mxu0
    %v413 = vadd.f32 0.0, %v412
    %414 = vmatmul.bf16.gmra.mxu0 %v369
    %v415 = vpop.f32.mrf.mxu0
    %v416 = vadd.f32 0.0, %v415
    %v417 = vpop.f32.mrf.mxu0
    %v418 = vadd.f32 0.0, %v417
    %419 = vdwg.mxu0
    %424 = vrot.lane.b32.xlu0 %v391, 127
    %v425 = vpop.permute.xlu0 %424
    %426 = vrot.lane.b32.xlu0 %v393, 127
    %v427 = vpop.permute.xlu0 %426
    %428 = vrot.lane.b32.xlu0 %v396, 127
    %v429 = vpop.permute.xlu0 %428
    %430 = vrot.lane.b32.xlu0 %v398, 127
    %v431 = vpop.permute.xlu0 %430
    %v436 = vadd.f32 %v381, %v425
    %v437 = vadd.f32 %v383, %v427
    %v438 = vadd.f32 %v386, %v429
    %v439 = vadd.f32 %v388, %v431
    %444 = vrot.lane.b32.xlu0 %v401, 126
    %v445 = vpop.permute.xlu0 %444
    %446 = vrot.lane.b32.xlu0 %v403, 126
    %v447 = vpop.permute.xlu0 %446
    %448 = vrot.lane.b32.xlu0 %v406, 126
    %v449 = vpop.permute.xlu0 %448
    %450 = vrot.lane.b32.xlu0 %v408, 126
    %v451 = vpop.permute.xlu0 %450
    %v456 = vadd.f32 %v436, %v445
    %v457 = vadd.f32 %v437, %v447
    %v458 = vadd.f32 %v438, %v449
    %v459 = vadd.f32 %v439, %v451
    %v460 = vld [vmem:[#allocation4 + $0x48] sm:$0xff]
    %v461 = vld [vmem:[#allocation4 + $0x50] sm:$0xff]
    %v462 = vld [vmem:[#allocation4 + $0x58] sm:$0xff]
    %v463 = vld [vmem:[#allocation4 + $0x60] sm:$0xff]
    %v464 = vld [vmem:[#allocation4 + $0x68] sm:$0xff]
    %v465 = vld [vmem:[#allocation4 + $0x70] sm:$0xff]
    %v466 = vld [vmem:[#allocation4 + $0x78] sm:$0xff]
    %v467 = vld [vmem:[#allocation4 + $0x80] sm:$0xff]
    %v468 = vld [vmem:[#allocation4 + $0x88] sm:$0xff]
    %v469 = vld [vmem:[#allocation4 + $0x90] sm:$0xff]
    %v470 = vld [vmem:[#allocation4 + $0x98] sm:$0xff]
    %v471 = vld [vmem:[#allocation4 + $0xa0] sm:$0xff]
    %473 = vset.pattern.permute.xlu0 0
    %474 = vperm.xlu0 %473, %v460
    %v475 = vpop.permute.xlu0 %474
    %478 = vset.pattern.permute.xlu0 0
    %479 = vperm.xlu0 %478, %v461
    %v480 = vpop.permute.xlu0 %479
    %483 = vset.pattern.permute.xlu0 0
    %484 = vperm.xlu0 %483, %v462
    %v485 = vpop.permute.xlu0 %484
    %488 = vset.pattern.permute.xlu0 0
    %489 = vperm.xlu0 %488, %v463
    %v490 = vpop.permute.xlu0 %489
    %v492 = vmul.f32 %v456, %v475
    %v493 = vmul.f32 %v457, %v480
    %v494 = vmul.f32 %v458, %v485
    %v495 = vmul.f32 %v459, %v490
    %497 = vset.pattern.permute.xlu0 0
    %498 = vperm.xlu0 %497, %v464
    %v499 = vpop.permute.xlu0 %498
    %502 = vset.pattern.permute.xlu0 0
    %503 = vperm.xlu0 %502, %v465
    %v504 = vpop.permute.xlu0 %503
    %507 = vset.pattern.permute.xlu0 0
    %508 = vperm.xlu0 %507, %v466
    %v509 = vpop.permute.xlu0 %508
    %512 = vset.pattern.permute.xlu0 0
    %513 = vperm.xlu0 %512, %v467
    %v514 = vpop.permute.xlu0 %513
    %v516 = vadd.f32 %v492, %v499
    %v517 = vadd.f32 %v493, %v504
    %v518 = vadd.f32 %v494, %v509
    %v519 = vadd.f32 %v495, %v514
    %v520 = vmax.f32 %v516, 0.0
    %v521 = vmax.f32 %v517, 0.0
    %v522 = vmax.f32 %v518, 0.0
    %v523 = vmax.f32 %v519, 0.0
    %525 = vset.pattern.permute.xlu0 0
    %526 = vperm.xlu0 %525, %v468
    %v527 = vpop.permute.xlu0 %526
    %530 = vset.pattern.permute.xlu0 0
    %531 = vperm.xlu0 %530, %v469
    %v532 = vpop.permute.xlu0 %531
    %535 = vset.pattern.permute.xlu0 0
    %536 = vperm.xlu0 %535, %v470
    %v537 = vpop.permute.xlu0 %536
    %540 = vset.pattern.permute.xlu0 0
    %541 = vperm.xlu0 %540, %v471
    %v542 = vpop.permute.xlu0 %541
    %v544 = vadd.f32 %v411, %v527
    %v545 = vadd.f32 %v413, %v532
    %v546 = vadd.f32 %v416, %v537
    %v547 = vadd.f32 %v418, %v542
    %v548 = vmax.f32 %v544, 0.0
    %v549 = vmax.f32 %v545, 0.0
    %v550 = vmax.f32 %v546, 0.0
    %v551 = vmax.f32 %v547, 0.0
    %556 = vrot.lane.b32.xlu0 %v548, 127
    %v557 = vpop.permute.xlu0 %556
    %558 = vrot.lane.b32.xlu0 %v549, 127
    %v559 = vpop.permute.xlu0 %558
    %560 = vrot.lane.b32.xlu0 %v550, 127
    %v561 = vpop.permute.xlu0 %560
    %562 = vrot.lane.b32.xlu0 %v551, 127
    %v563 = vpop.permute.xlu0 %562
    %v568 = vadd.f32 %v520, %v557
    %v569 = vadd.f32 %v521, %v559
    %v570 = vadd.f32 %v522, %v561
    %v571 = vadd.f32 %v523, %v563
    %v572 = vld [vmem:[#allocation2 + $0x70] sm:$0xf]
    %v573 = vld [vmem:[#allocation2 + $0x74] sm:$0xf]
    %v574 = vld [vmem:[#allocation2 + $0x78] sm:$0xf]
    %v575 = vld [vmem:[#allocation2 + $0x7c] sm:$0xf]
    %v576 = vld [vmem:[#allocation4 + $0xaa] sm:$0x1]
    %v577 = vpack.c.bf16 %v568, %v568
    %v578 = vpack.c.bf16 %v569, %v569
    %v579 = vpack.c.bf16 %v570, %v570
    %v580 = vpack.c.bf16 %v571, %v571
    %v581 = vperm.slane %v576, 0
    %v586 = vunpack.c.l.b16 %v577
    %v587 = vunpack.c.l.b16 %v578
    %v588 = vunpack.c.l.b16 %v579
    %v589 = vunpack.c.l.b16 %v580
    %v590 = vpack.c.b16 %v587, %v586
    %v591 = vpack.c.b16 %v589, %v588
    %v596 = vunpack.c.l.b16 %v572
    %v597 = vunpack.c.l.b16 %v573
    %v598 = vunpack.c.l.b16 %v574
    %v599 = vunpack.c.l.b16 %v575
    %v600 = vpack.c.b16 %v597, %v596
    %v601 = vpack.c.b16 %v599, %v598
    %vm604 = vcmask 261120
    %v606 = vsel %vm604, %v590, 0
    %v609 = vsel %vm604, %v591, 0
    %611 = vmatpush.bf16.msra.mxu0 0
    %612 = vmatpush.bf16.msra.mxu0 0
    %613 = vmatpush.bf16.msra.mxu0 0
    %614 = vmatpush.bf16.msra.mxu0 0
    %615 = vmatpush.bf16.msra.mxu0 0
    %616 = vmatpush.bf16.msra.mxu0 0
    %617 = vmatpush.bf16.msra.mxu0 %v601
    %618 = vmatpush.bf16.msra.mxu0 %v600
    %619 = vmatmul.bf16.gmra.mxu0 %v606
    %v620 = vpop.f32.mrf.mxu0
    %v621 = vadd.f32 %v581, %v620
    %v622 = vpop.f32.mrf.mxu0
    %v623 = vadd.f32 %v581, %v622
    %624 = vmatmul.bf16.gmra.mxu0 %v609
    %v625 = vpop.f32.mrf.mxu0
    %v626 = vadd.f32 %v581, %v625
    %v627 = vpop.f32.mrf.mxu0
    %v628 = vadd.f32 %v581, %v627
    %629 = vdwg.mxu0
    %630 = vst.msk [vmem:[%s3] sm:$0xff] %vm163, %v621
    %631 = vst.msk [vmem:[%s3 + $0x8] sm:$0xff] %vm163, %v623
    %632 = vst.msk [vmem:[%s3 + $0x10] sm:$0xff] %vm163, %v626
    %633 = vst.msk [vmem:[%s3 + $0x18] sm:$0xff] %vm163, %v628
    %634 = vrot.lane.b32.xlu0 %v590, 90
    %v635 = vpop.permute.xlu0 %634
    %636 = vrot.lane.b32.xlu0 %v591, 90
    %v637 = vpop.permute.xlu0 %636
    %v639 = vsel %vm604, %v635, 0
    %v642 = vsel %vm604, %v637, 0
    %644 = vmatpush.bf16.msra.mxu0 0
    %645 = vmatpush.bf16.msra.mxu0 0
    %646 = vmatpush.bf16.msra.mxu0 0
    %647 = vmatpush.bf16.msra.mxu0 0
    %648 = vmatpush.bf16.msra.mxu0 0
    %649 = vmatpush.bf16.msra.mxu0 0
    %650 = vmatpush.bf16.msra.mxu0 %v601
    %651 = vmatpush.bf16.msra.mxu0 %v600
    %652 = vmatmul.bf16.gmra.mxu0 %v639
    %v653 = vpop.f32.mrf.mxu0
    %v654 = vadd.f32 %v581, %v653
    %v655 = vpop.f32.mrf.mxu0
    %v656 = vadd.f32 %v581, %v655
    %657 = vmatmul.bf16.gmra.mxu0 %v642
    %v658 = vpop.f32.mrf.mxu0
    %v659 = vadd.f32 %v581, %v658
    %v660 = vpop.f32.mrf.mxu0
    %v661 = vadd.f32 %v581, %v660
    %662 = vdwg.mxu0
    %s663 = scalar_lea.vmem %s3, 32
    %664 = vst.msk [vmem:[%s663] sm:$0xff] %vm163, %v654
    %665 = vst.msk [vmem:[%s663 + $0x8] sm:$0xff] %vm163, %v656
    %666 = vst.msk [vmem:[%s663 + $0x10] sm:$0xff] %vm163, %v659
    %667 = vst.msk [vmem:[%s663 + $0x18] sm:$0xff] %vm163, %v661
    // Predicated region
    $region22: #{_lambda_.1} parent=1 // pred_check
      _
    $region23: #{_lambda_.1} parent=1 // pred_check_branch
      %669 = sbr.rel (0) target = $region25
    $region24: #{_lambda_.1} parent=1 // pred_region
      _
    $region25: #{_lambda_.1} parent=1 // pred_fallthru
      _
    // Predicated region
    $region26: #{_lambda_.1} parent=1 // pred_check
      _
    $region27: #{_lambda_.1} parent=1 // pred_check_branch
      %671 = sbr.rel (0) target = $region29
    $region28: #{_lambda_.1} parent=1 // pred_region
      _
    $region29: #{_lambda_.1} parent=1 // pred_fallthru
      _
    %672 = vsyncpa [#allocation3], 1
    %673 = vsyncpa [#allocation5], 1

</llo_original>
